<compile_context>
chip_gen: v6e
topology: v6e:2x2x1
jax: 0.10.0
libtpu: 0.0.40
codegen_flags: <defaults>
</compile_context>

<pallas_src>
import functools
import math

import jax
import jax.numpy as jnp
from jax.experimental import pallas as pl
from jax.experimental.pallas import tpu as pltpu

SCALE_FACTOR = 2.0
LANES = 128
MAX_BLOCK_ROWS = 4096   # 4096x128 f32 = 2 MiB/input/step; 2 inputs double-buffered ~8 MiB VMEM
ACC_ROWS = 512          # fixed-size f32 accumulator (256 KiB), independent of block size


def _tensorcores_per_device():
    """2 for chips with two TensorCores per JAX device (v4/v5p megacore, v7x), else 1."""
    try:
        kind = jax.devices()[0].device_kind.lower()
    except Exception:
        return 1
    return 2 if ("v4" in kind or "v5p" in kind or "v7" in kind) else 1


def _weighted_bce_kernel(x_ref, t_ref, out_ref, acc_ref, *, scale, binary,
                         rows_valid, block_rows, acc_rows, needs_mask):
    p = pl.program_id(0)
    i = pl.program_id(1)
    steps = pl.num_programs(1)

    @pl.when(i == 0)
    def _():
        acc_ref[...] = jnp.zeros_like(acc_ref)

    if needs_mask:
        block_row0 = (p * steps + i) * block_rows

    n_sub = block_rows // acc_rows
    for s in range(n_sub):                       # static unroll over acc_rows-sized sub-slices
        x = x_ref[s * acc_rows:(s + 1) * acc_rows, :]
        t = t_ref[s * acc_rows:(s + 1) * acc_rows, :]
        if x.dtype != jnp.float32:
            x = x.astype(jnp.float32)
        if t.dtype != jnp.float32:
            t = t.astype(jnp.float32)

        if needs_mask:
            # Ragged final block: mask the INPUTS (x=1, t=1) before the log so the unspecified
            # out-of-range rows contribute exactly 0 and can never inject NaN/Inf.
            row = (jax.lax.broadcasted_iota(jnp.int32, (acc_rows, LANES), 0)
                   + (block_row0 + s * acc_rows))
            valid = row < rows_valid
            x = jnp.where(valid, x, jnp.float32(1.0))
            t = jnp.where(valid, t, jnp.float32(1.0))

        if binary:
            # targets known to be {0,1}: one transcendental per element; sign and weight
            # folded into a single select constant.
            pos = t > 0.5
            logterm = jnp.maximum(jnp.log(jnp.where(pos, x, 1.0 - x)), -100.0)
            val = jnp.where(pos, jnp.float32(-math.exp(scale)),
                            jnp.float32(-1.0)) * logterm
        else:
            # torch.nn.functional.binary_cross_entropy clamps each log term at -100
            log_x = jnp.maximum(jnp.log(x), -100.0)
            log_1mx = jnp.maximum(jnp.log1p(-x), -100.0)
            val = -(t * log_x + (1.0 - t) * log_1mx) * jnp.exp(scale * t)

        acc_ref[...] += val                      # VPU only; hides under the input DMA

    @pl.when(i == pl.num_programs(1) - 1)
    def _():
        out_ref[0, 0] = jnp.sum(acc_ref[...])    # single XLU cross-lane reduce per part


@functools.partial(jax.jit,
                   static_argnames=("scale_factor", "binary_targets", "max_block_rows"))
def exponential_weighted_bce_loss(inputs, targets, scale_factor=SCALE_FACTOR,
                                  binary_targets=False, max_block_rows=MAX_BLOCK_ROWS):
    """Scalar mean(exp(scale*t) * BCE(x, t)) over all elements."""
    n = inputs.size
    x = inputs.reshape(-1)                       # free contiguous reshape
    t = targets.reshape(-1)

    rem = n % LANES
    if rem == 0:
        rows = n // LANES
        x2d = x.reshape(rows, LANES)             # free: no data movement
        t2d = t.reshape(rows, LANES)
    else:
        # TODO(synk): lane-tail pad still materializes a copy; rare for image losses.
        pad = LANES - rem
        rows = (n + pad) // LANES
        # pad with x=1, t=1: bce(1,1) == 0 exactly in both paths -> zero contribution.
        x2d = jnp.pad(x, (0, pad), constant_values=1).reshape(rows, LANES)
        t2d = jnp.pad(t, (0, pad), constant_values=1).reshape(rows, LANES)

    if rows <= max_block_rows:
        block_rows = rows                        # single full-dim block (always legal)
    else:
        assert max_block_rows % 8 == 0, "max_block_rows must be a multiple of 8"
        block_rows = max_block_rows
    acc_rows = ACC_ROWS if block_rows % ACC_ROWS == 0 else block_rows

    blocks_total = (rows + block_rows - 1) // block_rows
    needs_mask = blocks_total * block_rows != rows   # ragged final block -> in-kernel mask

    num_parts = 2 if (_tensorcores_per_device() >= 2
                      and blocks_total >= 2 and blocks_total % 2 == 0) else 1
    steps = blocks_total // num_parts

    kernel = functools.partial(
        _weighted_bce_kernel, scale=float(scale_factor), binary=bool(binary_targets),
        rows_valid=rows, block_rows=block_rows, acc_rows=acc_rows, needs_mask=needs_mask)

    elem_bytes = x2d.dtype.itemsize + t2d.dtype.itemsize
    transc = n * (1 if binary_targets else 3)
    flops = n * (7 if binary_targets else 12)

    partials = pl.pallas_call(
        kernel,
        out_shape=jax.ShapeDtypeStruct((num_parts, 1), jnp.float32),
        grid_spec=pltpu.PrefetchScalarGridSpec(
            num_scalar_prefetch=0,
            grid=(num_parts, steps),
            in_specs=[
                pl.BlockSpec((block_rows, LANES), lambda p, i: (p * steps + i, 0)),
                pl.BlockSpec((block_rows, LANES), lambda p, i: (p * steps + i, 0)),
            ],
            out_specs=pl.BlockSpec((1, 1), lambda p, i: (p, 0),
                                   memory_space=pltpu.SMEM),
            scratch_shapes=[pltpu.VMEM((acc_rows, LANES), jnp.float32)],
        ),
        compiler_params=pltpu.CompilerParams(
            dimension_semantics=("parallel", "arbitrary"),
            vmem_limit_bytes=32 << 20,
        ),
        cost_estimate=pl.CostEstimate(
            flops=flops, transcendentals=transc,
            bytes_accessed=rows * LANES * elem_bytes + num_parts * 4),
    )(x2d, t2d)

    return jnp.sum(partials) * jnp.float32(1.0 / n)


def _reference(inputs, targets, scale_factor=SCALE_FACTOR):
    x = inputs.astype(jnp.float32)
    t = targets.astype(jnp.float32)
    log_x = jnp.maximum(jnp.log(x), -100.0)
    log_1mx = jnp.maximum(jnp.log1p(-x), -100.0)
    bce = -(t * log_x + (1.0 - t) * log_1mx)
    return jnp.mean(bce * jnp.exp(scale_factor * t))


if __name__ == "__main__":
    key = jax.random.PRNGKey(0)
    k1, k2, k3, k4 = jax.random.split(key, 4)

    # shapes consistent with a segmentation-style use: NCHW [2, 4, 16, 16]
    shape = (2, 4, 16, 16)
    # inputs must be probabilities in (0, 1) (post-sigmoid), targets in {0, 1}
    inputs = jax.nn.sigmoid(jax.random.normal(k1, shape, dtype=jnp.float32))
    targets = jax.random.bernoulli(k2, p=0.3, shape=shape).astype(jnp.float32)

    ref = _reference(inputs, targets, SCALE_FACTOR)

    # general (soft-target capable) path, zero-copy 128-aligned case
    loss = jax.block_until_ready(
        exponential_weighted_bce_loss(inputs, targets, scale_factor=SCALE_FACTOR))
    assert jnp.allclose(loss, ref, rtol=1e-5, atol=1e-5), (loss, ref)

    # binary-target fast path must agree (targets here are {0,1})
    loss_bin = jax.block_until_ready(
        exponential_weighted_bce_loss(inputs, targets, scale_factor=SCALE_FACTOR,
                                      binary_targets=True))
    assert jnp.allclose(loss_bin, ref, rtol=1e-5, atol=1e-5), (loss_bin, ref)

    # ragged case: exercises the lane-tail pad AND the in-kernel row mask
    # (2*3*16*17 = 1632 elements -> 13 rows of 128; max_block_rows=8 -> partial final block)
    shape2 = (2, 3, 16, 17)
    inputs2 = jax.nn.sigmoid(jax.random.normal(k3, shape2, dtype=jnp.float32))
    targets2 = jax.random.bernoulli(k4, p=0.3, shape=shape2).astype(jnp.float32)
    ref2 = _reference(inputs2, targets2, SCALE_FACTOR)
    loss2 = jax.block_until_ready(
        exponential_weighted_bce_loss(inputs2, targets2, scale_factor=SCALE_FACTOR,
                                      max_block_rows=8))
    assert jnp.allclose(loss2, ref2, rtol=1e-5, atol=1e-5), (loss2, ref2)

    # native narrow-dtype pass-through (bf16 probabilities); kernel casts on the VPU
    inputs_bf16 = inputs.astype(jnp.bfloat16)
    ref3 = _reference(inputs_bf16, targets, SCALE_FACTOR)
    loss3 = jax.block_until_ready(
        exponential_weighted_bce_loss(inputs_bf16, targets, scale_factor=SCALE_FACTOR))
    assert jnp.allclose(loss3, ref3, rtol=1e-5, atol=1e-5), (loss3, ref3)

    print("KERNEL_OK")
</pallas_src>

<mosaic_0001>
module attributes {stable_mosaic.version = 11 : i64} {
  func.func @_weighted_bce_kernel(%arg0: i32, %arg1: i32, %arg2: memref<16x128xf32, #tpu.memory_space<vmem>>, %arg3: memref<16x128xf32, #tpu.memory_space<vmem>>, %arg4: memref<1x1xf32, #tpu.memory_space<smem>>, %arg5: memref<16x128xf32, #tpu.memory_space<vmem>>) attributes {dimension_semantics = [#tpu.dimension_semantics<parallel>, #tpu.dimension_semantics<arbitrary>], iteration_bounds = array<i64: 1, 1>, scalar_prefetch = 0 : i64, scratch_operands = 1 : i64, tpu.core_type = #tpu.core_type<tc>, window_params = [{transform_indices = @transform_0, window_bounds = array<i64: 16, 128>}, {transform_indices = @transform_1, window_bounds = array<i64: 16, 128>}, {transform_indices = @transform_2, window_bounds = array<i64: 1, 1>}]} {
    %c0_i32 = arith.constant 0 : i32
    %0 = arith.cmpi eq, %arg1, %c0_i32 : i32
    %1 = arith.extui %0 : i1 to i32
    %c0_i32_0 = arith.constant 0 : i32
    %2 = arith.cmpi ne, %1, %c0_i32_0 : i32
    scf.if %2 {
      %cst_15 = arith.constant 0.000000e+00 : f32
      %30 = vector.broadcast %cst_15 : f32 to vector<16x128xf32>
      %c0_16 = arith.constant 0 : index
      %c0_17 = arith.constant 0 : index
      %31 = vector.load %arg5[%c0_16, %c0_17] : memref<16x128xf32, #tpu.memory_space<vmem>>, vector<16x128xf32>
      tpu.vector_store %arg5[%c0_16, %c0_17], %30 {strides = array<i32>} : memref<16x128xf32, #tpu.memory_space<vmem>>, vector<16x128xf32>,
    } else {
    }
    %c0 = arith.constant 0 : index
    %c0_1 = arith.constant 0 : index
    %3 = vector.load %arg2[%c0, %c0_1] : memref<16x128xf32, #tpu.memory_space<vmem>>, vector<16x128xf32>
    %c0_2 = arith.constant 0 : index
    %c0_3 = arith.constant 0 : index
    %4 = vector.load %arg3[%c0_2, %c0_3] : memref<16x128xf32, #tpu.memory_space<vmem>>, vector<16x128xf32>
    %5 = math.log %3 : vector<16x128xf32>
    %cst = arith.constant -1.000000e+02 : f32
    %6 = vector.broadcast %cst : f32 to vector<16x128xf32>
    %7 = arith.maximumf %5, %6 : vector<16x128xf32>
    %cst_4 = arith.constant 0.000000e+00 : f32
    %8 = vector.broadcast %cst_4 : f32 to vector<16x128xf32>
    %9 = arith.subf %8, %3 : vector<16x128xf32>
    %10 = math.log1p %9 : vector<16x128xf32>
    %cst_5 = arith.constant -1.000000e+02 : f32
    %11 = vector.broadcast %cst_5 : f32 to vector<16x128xf32>
    %12 = arith.maximumf %10, %11 : vector<16x128xf32>
    %13 = arith.mulf %4, %7 : vector<16x128xf32>
    %cst_6 = arith.constant 1.000000e+00 : f32
    %14 = vector.broadcast %cst_6 : f32 to vector<16x128xf32>
    %15 = arith.subf %14, %4 : vector<16x128xf32>
    %16 = arith.mulf %15, %12 : vector<16x128xf32>
    %17 = arith.addf %13, %16 : vector<16x128xf32>
    %cst_7 = arith.constant 0.000000e+00 : f32
    %18 = vector.broadcast %cst_7 : f32 to vector<16x128xf32>
    %19 = arith.subf %18, %17 : vector<16x128xf32>
    %cst_8 = arith.constant 2.000000e+00 : f32
    %20 = vector.broadcast %cst_8 : f32 to vector<16x128xf32>
    %21 = arith.mulf %20, %4 : vector<16x128xf32>
    %22 = math.exp %21 : vector<16x128xf32>
    %23 = arith.mulf %19, %22 : vector<16x128xf32>
    %c0_9 = arith.constant 0 : index
    %c0_10 = arith.constant 0 : index
    %24 = vector.load %arg5[%c0_9, %c0_10] : memref<16x128xf32, #tpu.memory_space<vmem>>, vector<16x128xf32>
    %25 = arith.addf %24, %23 : vector<16x128xf32>
    %c0_11 = arith.constant 0 : index
    %c0_12 = arith.constant 0 : index
    %26 = vector.load %arg5[%c0_11, %c0_12] : memref<16x128xf32, #tpu.memory_space<vmem>>, vector<16x128xf32>
    tpu.vector_store %arg5[%c0_11, %c0_12], %25 {strides = array<i32>} : memref<16x128xf32, #tpu.memory_space<vmem>>, vector<16x128xf32>,
    %c0_i32_13 = arith.constant 0 : i32
    %27 = arith.cmpi eq, %arg1, %c0_i32_13 : i32
    %28 = arith.extui %27 : i1 to i32
    %c0_i32_14 = arith.constant 0 : i32
    %29 = arith.cmpi ne, %28, %c0_i32_14 : i32
    scf.if %29 {
      %c0_15 = arith.constant 0 : index
      %c0_16 = arith.constant 0 : index
      %30 = vector.load %arg5[%c0_15, %c0_16] : memref<16x128xf32, #tpu.memory_space<vmem>>, vector<16x128xf32>
      %31 = vector.shape_cast %30 : vector<16x128xf32> to vector<1x16x128xf32>
      %cst_17 = arith.constant dense<0.000000e+00> : vector<1xf32>
      %32 = vector.multi_reduction <add>, %31, %cst_17 [1, 2] : vector<1x16x128xf32> to vector<1xf32>
      %33 = vector.shape_cast %32 : vector<1xf32> to vector<1x1x1xf32>
      %34 = vector.extract %33[0, 0, 0] : f32 from vector<1x1x1xf32>
      %c0_18 = arith.constant 0 : index
      %c0_19 = arith.constant 0 : index
      %35 = memref.load %arg4[%c0_18, %c0_19] : memref<1x1xf32, #tpu.memory_space<smem>>
      memref.store %34, %arg4[%c0_18, %c0_19] : memref<1x1xf32, #tpu.memory_space<smem>>
    } else {
    }
    return
  }
  func.func @transform_0(%arg0: i32, %arg1: i32) -> (i32, i32) {
    %c1_i32 = arith.constant 1 : i32
    %0 = arith.muli %arg0, %c1_i32 : i32
    %1 = arith.addi %0, %arg1 : i32
    %c0_i32 = arith.constant 0 : i32
    %c0_i32_0 = arith.constant 0 : i32
    return %1, %c0_i32 : i32, i32
  }
  func.func @transform_1(%arg0: i32, %arg1: i32) -> (i32, i32) {
    %c1_i32 = arith.constant 1 : i32
    %0 = arith.muli %arg0, %c1_i32 : i32
    %1 = arith.addi %0, %arg1 : i32
    %c0_i32 = arith.constant 0 : i32
    %c0_i32_0 = arith.constant 0 : i32
    return %1, %c0_i32 : i32, i32
  }
  func.func @transform_2(%arg0: i32, %arg1: i32) -> (i32, i32) {
    %c0_i32 = arith.constant 0 : i32
    %c0_i32_0 = arith.constant 0 : i32
    return %arg0, %c0_i32 : i32, i32
  }
}

</mosaic_0001>

<llo_original>
// kernel: exponential_weighted_bce_loss.1
$region0: #{exponential_weighted_bce_loss.1}
  #allocation0 [shape = 'u32[]', space=smem, size = 0x4, offset = 0x4, fixed_abs, tag = 'smem constant byte address 0x4 - core index']
  #allocation1 [shape = 'u32[144,128]{1,0:T(1,128)}', space=vmem, size = 0x12000, scoped, tag = 'internal scratch']
  #allocation2 [shape = 'f32[16,128]{1,0:T(8,128)}', space=vmem, size = 0x2000, scoped, tag = 'scratch operand']
  %s0 = inlined_call_operand.vmem [shape: f32[16,128], index: 0, kind: input, shape index: {}]
  %s1 = inlined_call_operand.vmem [shape: f32[16,128], index: 1, kind: input, shape index: {}]
  %s2 = inlined_call_operand.hbm [shape: f32[1,1], index: 2, kind: output, shape index: {}]
  %s3 = sld [smem:[#allocation0]]
  $region26: #{exponential_weighted_bce_loss.1} parent=0
    _
  %s5 = ssub.s32 1, %s3
  %s6 = scalar_select 0, %s5, %s3
  $region1: #{exponential_weighted_bce_loss.1} parent=0
    #allocation3 [shape = 'u8[512]{0}', space=smem, size = 0x200, scoped, tag = 'output window, operand 0, single buffered']
    #allocation4 [shape = 's32[1]{0}', space=sflag, size = 0x4, scoped, tag = 'scoped memory for exponential_weighted_bce_loss.1']
    %7 = vsyncpa [#allocation4], 0
    // Predicated region
    $region2: #{exponential_weighted_bce_loss.1} parent=1 // pred_check
      _
    $region3: #{exponential_weighted_bce_loss.1} parent=1 // pred_check_branch
      %9 = sbr.rel (0) target = $region5
    $region4: #{exponential_weighted_bce_loss.1} parent=1 // pred_region
      %s10 = sadd.s32 0, 0
      %s11 = smul.u32 2, %s10
      %p12 = scmp.lt.s32.totalorder %s11, 1
      %s13 = scalar_select %p12, %s11, 1
      %s14 = smul.addr %s13, 8
      %s15 = scalar_lea.vmem %s0, %s14
      %s16 = sadd.s32 0, 0
      %s17 = smul.u32 2, %s16
    $region5: #{exponential_weighted_bce_loss.1} parent=1 // pred_fallthru
      _
    // Predicated region
    $region6: #{exponential_weighted_bce_loss.1} parent=1 // pred_check
      _
    $region7: #{exponential_weighted_bce_loss.1} parent=1 // pred_check_branch
      %19 = sbr.rel (0) target = $region9
    $region8: #{exponential_weighted_bce_loss.1} parent=1 // pred_region
      %s20 = sadd.s32 0, 0
      %s21 = smul.u32 2, %s20
      %p22 = scmp.lt.s32.totalorder %s21, 1
      %s23 = scalar_select %p22, %s21, 1
      %s24 = smul.addr %s23, 8
      %s25 = scalar_lea.vmem %s1, %s24
      %s26 = sadd.s32 0, 0
      %s27 = smul.u32 2, %s26
    $region9: #{exponential_weighted_bce_loss.1} parent=1 // pred_fallthru
      _
    %s28 = sadd.s32 0, 0
    %s29 = smul.u32 2, %s28
    %p30 = scmp.lt.s32.totalorder %s29, 1
    %s31 = scalar_select %p30, %s29, 1
    %s32 = smul.addr %s31, 8
    %s33 = scalar_lea.vmem %s0, %s32
    %s34 = sadd.s32 0, 0
    %s35 = smul.u32 2, %s34
    %p36 = scmp.lt.s32.totalorder %s35, 1
    %s37 = scalar_select %p36, %s35, 1
    %s38 = smul.addr %s37, 8
    %s39 = scalar_lea.vmem %s1, %s38
    %s40 = sadd.s32 0, 0
    %s41 = smul.u32 2, %s40
    %p42 = scmp.lt.s32.totalorder %s41, 1
    %s43 = scalar_select %p42, %s41, 1
    %s44 = smul.addr %s43, 8
    %s45 = scalar_lea.vmem %s0, %s44
    %s46 = sadd.s32 0, 0
    %s47 = smul.u32 2, %s46
    %s48 = sadd.s32 0, 0
    %s49 = smul.u32 2, %s48
    %p50 = scmp.lt.s32.totalorder %s49, 1
    %s51 = scalar_select %p50, %s49, 1
    %s52 = smul.addr %s51, 8
    %s53 = scalar_lea.vmem %s1, %s52
    %s54 = sadd.s32 0, 0
    %s55 = smul.u32 2, %s54
    %p56 = scmp.eq.s32.totalorder 0, 0
    // Predicated region
    $region10: #{exponential_weighted_bce_loss.1} parent=1 // pred_check
      %p57 = pneg %p56
    $region11: #{exponential_weighted_bce_loss.1} parent=1 // pred_check_branch
      %59 = sbr.rel (%p57) target = $region13
    $region12: #{exponential_weighted_bce_loss.1} parent=1 // pred_region
      %60 = vst [vmem:[#allocation2] sm:$0xff] 0.0
      %61 = vst [vmem:[#allocation2 + $0x8] sm:$0xff] 0.0
    $region13: #{exponential_weighted_bce_loss.1} parent=1 // pred_fallthru
      _
    %v62 = vld [vmem:[%s45] sm:$0xff]
    %v63 = vld [vmem:[%s45 + $0x8] sm:$0xff]
    %v64 = vld [vmem:[%s53] sm:$0xff]
    %v65 = vld [vmem:[%s53 + $0x8] sm:$0xff]
    %v66 = vlog2.pop %v62
    %v67 = vmul.f32 %v66, 0.6931472
    %v68 = vlog2.pop %v63
    %v69 = vmul.f32 %v68, 0.6931472
    %v70 = vmax.f32 %v67, -100.0
    %v71 = vmax.f32 %v69, -100.0
    %v72 = vsub.f32 0.0, %v62
    %v73 = vsub.f32 0.0, %v63
    %v74 = vadd.f32 %v72, 1.0
    %v75 = vlog2.pop %v74
    %v76 = vmul.f32 %v75, 0.6931472
    %v77 = vmul.f32 -0.5, %v72
    %v78 = vadd.f32 %v77, 1.0
    %v79 = vmul.f32 %v78, %v72
    %v80 = vand.u32 2147483647, %v72
    %vm81 = vcmp.lt.f32.partialorder %v80, 0.0004427343
    %v82 = vsel %vm81, %v79, %v76
    %v83 = vadd.f32 %v73, 1.0
    %v84 = vlog2.pop %v83
    %v85 = vmul.f32 %v84, 0.6931472
    %v86 = vmul.f32 -0.5, %v73
    %v87 = vadd.f32 %v86, 1.0
    %v88 = vmul.f32 %v87, %v73
    %v89 = vand.u32 2147483647, %v73
    %vm90 = vcmp.lt.f32.partialorder %v89, 0.0004427343
    %v91 = vsel %vm90, %v88, %v85
    %v92 = vmax.f32 %v82, -100.0
    %v93 = vmax.f32 %v91, -100.0
    %v94 = vmul.f32 %v64, %v70
    %v95 = vmul.f32 %v65, %v71
    %v96 = vsub.f32 1.0, %v64
    %v97 = vsub.f32 1.0, %v65
    %v98 = vmul.f32 %v96, %v92
    %v99 = vmul.f32 %v97, %v93
    %v100 = vadd.f32 %v94, %v98
    %v101 = vadd.f32 %v95, %v99
    %v102 = vsub.f32 0.0, %v100
    %v103 = vsub.f32 0.0, %v101
    %v104 = vmul.f32 %v64, 2.0
    %v105 = vmul.f32 %v65, 2.0
    %v106 = vmul.f32 %v104, 1.442695
    %v107 = vpow.pop %v106
    %v108 = vmul.f32 %v105, 1.442695
    %v109 = vpow.pop %v108
    %v110 = vmul.f32 %v102, %v107
    %v111 = vmul.f32 %v103, %v109
    %v112 = vld [vmem:[#allocation2] sm:$0xff]
    %v113 = vld [vmem:[#allocation2 + $0x8] sm:$0xff]
    %v114 = vadd.f32 %v112, %v110
    %v115 = vadd.f32 %v113, %v111
    %116 = vst [vmem:[#allocation2] sm:$0xff] %v114
    %117 = vst [vmem:[#allocation2 + $0x8] sm:$0xff] %v115
    // Predicated region
    $region14: #{exponential_weighted_bce_loss.1} parent=1 // pred_check
      %p118 = pneg %p56
    $region15: #{exponential_weighted_bce_loss.1} parent=1 // pred_check_branch
      %120 = sbr.rel (%p118) target = $region17
    $region16: #{exponential_weighted_bce_loss.1} parent=1 // pred_region
      %v121 = vld [vmem:[#allocation2] sm:$0xff]
      %v122 = vld [vmem:[#allocation2 + $0x8] sm:$0xff]
      %v123 = vadd.f32 %v121, %v122
      %124 = vadd.xlane.f32.xlu0 %v123
      %v125 = vpop.xlane.xlu0 %124
      %v126 = vrot.slane %v125, 4
      %v127 = vadd.f32 %v125, %v126
      %v128 = vrot.slane %v127, 2
      %v129 = vadd.f32 %v127, %v128
      %v130 = vrot.slane %v129, 1
      %v131 = vadd.f32 %v129, %v130
      %s132 = vtos %v131
      %s133 = scalar_lea.smem [#allocation3], 0
      %134 = sst [smem:[%s133]] %s132
    $region17: #{exponential_weighted_bce_loss.1} parent=1 // pred_fallthru
      _
    // Predicated region
    $region18: #{exponential_weighted_bce_loss.1} parent=1 // pred_check
      _
    $region19: #{exponential_weighted_bce_loss.1} parent=1 // pred_check_branch
      %136 = sbr.rel (0) target = $region21
    $region20: #{exponential_weighted_bce_loss.1} parent=1 // pred_region
      %s138 = ssub.s32 16, 16
      %139 = vsyncadd [#allocation4], %s138
      %142 = dma.smem_to_hbm [#allocation3], 16, %s2, [#allocation4]
    $region21: #{exponential_weighted_bce_loss.1} parent=1 // pred_fallthru
      _
    // Predicated region
    $region22: #{exponential_weighted_bce_loss.1} parent=1 // pred_check
      _
    $region23: #{exponential_weighted_bce_loss.1} parent=1 // pred_check_branch
      %144 = sbr.rel (0) target = $region25
    $region24: #{exponential_weighted_bce_loss.1} parent=1 // pred_region
      %145 = dma.done [#allocation4], 16
    $region25: #{exponential_weighted_bce_loss.1} parent=1 // pred_fallthru
      _
    %146 = sfence
    %147 = vsyncpa [#allocation4], 1

</llo_original>
